<compile_context>
chip_gen: v5e
topology: v5e:2x2
jax: 0.10.0
libtpu: 0.0.40
codegen_flags: <defaults>
</compile_context>

<pallas_src>
import jax
import jax.numpy as jnp
from jax.experimental import pallas as pl
from jax.experimental.pallas import tpu as pltpu

N = 16  # matrix side (matches the 16x16 example inputs)


def _model_kernel(a1_ref, a2_ref, a3_ref, a4_ref, wb_ref, out_ref):
    """Fused kernel.

    a1..a4_ref : (N, N)   the four activation matrices
    wb_ref     : (N+1, N) pre-packed [W.T ; b] (built once at init time)
    out_ref    : (5*N, N) row-blocks [o1; o2; o3; o4; o5]
    """
    a1 = a1_ref[...]
    a2 = a2_ref[...]
    a3 = a3_ref[...]
    a4 = a4_ref[...]

    # Stage 1: 5 products via 3 MXU matmuls, grouped by shared RHS
    # (one weight load of a3 / a4 each instead of two).
    g13 = jnp.dot(jnp.concatenate((a1, a3), axis=0), a3,
                  preferred_element_type=jnp.float32)          # [t1; t4]  (32,16)
    g24 = jnp.dot(jnp.concatenate((a2, a4), axis=0), a4,
                  preferred_element_type=jnp.float32)          # [t3; t5]  (32,16)
    t2 = jnp.dot(a2, a1, preferred_element_type=jnp.float32)   # (16,16)

    # T in natural group order (no interleaving shuffle on the critical path):
    #   rows:  [t1; t4; t3; t5; t2]                            (80,16)
    T = jnp.concatenate((g13, g24, t2), axis=0)

    # Stage 2: fused Linear over all 5 blocks — one MXU weight load of W.T,
    # one bias broadcast.
    w_t = wb_ref[0:N]                                          # W.T  (16,16)
    bias = wb_ref[N:N + 1]                                     # (1,16)
    lin = jnp.dot(T, w_t, preferred_element_type=jnp.float32) + bias   # (80,16)

    # Stage 3: out[i] = t_i @ lin_i, stored directly into the correct output
    # row-block (static slice stores; no output concat temporary).
    # T row-block -> output row-block:  t1->0, t4->3, t3->2, t5->4, t2->1
    for src, dst in ((0, 0), (1, 3), (2, 2), (3, 4), (4, 1)):
        out_ref[dst * N:(dst + 1) * N, :] = jnp.dot(
            T[src * N:(src + 1) * N, :], lin[src * N:(src + 1) * N, :],
            preferred_element_type=jnp.float32)


def pack_linear_params(w, b):
    """One-time (init-time) packing of the Linear parameters: [W.T ; b]."""
    return jnp.concatenate((w.T, b), axis=0)                   # (17, 16)


@jax.jit
def model_forward(input1, input2, input3, input4, wb_packed):
    """input*: (N, N) f32; wb_packed: (N+1, N) f32 -> (5, N, N) f32."""
    vmem = pl.BlockSpec(memory_space=pltpu.MemorySpace.VMEM)
    out_flat = pl.pallas_call(
        _model_kernel,
        out_shape=jax.ShapeDtypeStruct((5 * N, N), jnp.float32),
        in_specs=[vmem, vmem, vmem, vmem, vmem],
        out_specs=vmem,
    )(input1, input2, input3, input4, wb_packed)
    return out_flat.reshape(5, N, N)


def _reference(input1, input2, input3, input4, w, b):
    t1 = input1 @ input3
    t2 = input2 @ input1
    t3 = input2 @ input4
    t4 = input3 @ input3
    t5 = input4 @ input4
    concat = jnp.stack((t1, t2, t3, t4, t5), axis=0)
    lin = jnp.einsum("bij,kj->bik", concat, w) + b[None, :, :]
    return jnp.einsum("bij,bjk->bik", concat, lin)


if __name__ == "__main__":
    key = jax.random.PRNGKey(0)
    k1, k2, k3, k4, kw, kb = jax.random.split(key, 6)

    input1 = jax.random.normal(k1, (N, N), dtype=jnp.float32)
    input2 = jax.random.normal(k2, (N, N), dtype=jnp.float32)
    input3 = jax.random.normal(k3, (N, N), dtype=jnp.float32)
    input4 = jax.random.normal(k4, (N, N), dtype=jnp.float32)

    # Deterministic "nn.Linear" parameters (re-sized to 16x16, see TODO above).
    bound = 1.0 / jnp.sqrt(jnp.float32(N))
    w = jax.random.uniform(kw, (N, N), jnp.float32, -bound, bound)
    b = jax.random.uniform(kb, (1, N), jnp.float32, -bound, bound)

    # Hoisted off the per-call path: done once at parameter-init time.
    wb_packed = pack_linear_params(w, b)
    wb_packed = jax.block_until_ready(wb_packed)

    out = model_forward(input1, input2, input3, input4, wb_packed)
    out = jax.block_until_ready(out)

    ref = _reference(input1, input2, input3, input4, w, b)
    assert out.shape == (5, N, N)
    assert jnp.allclose(out, ref, atol=1e-4, rtol=1e-4), "mismatch vs reference"

    print("KERNEL_OK")
</pallas_src>

<mosaic_0001>
module attributes {stable_mosaic.version = 11 : i64} {
  func.func @_model_kernel(%arg0: memref<16x16xf32, #tpu.memory_space<vmem>>, %arg1: memref<16x16xf32, #tpu.memory_space<vmem>>, %arg2: memref<16x16xf32, #tpu.memory_space<vmem>>, %arg3: memref<16x16xf32, #tpu.memory_space<vmem>>, %arg4: memref<17x16xf32, #tpu.memory_space<vmem>>, %arg5: memref<80x16xf32, #tpu.memory_space<vmem>>) attributes {dimension_semantics = [], scalar_prefetch = 0 : i64, scratch_operands = 0 : i64, tpu.core_type = #tpu.core_type<tc>} {
    %c0 = arith.constant 0 : index
    %c0_0 = arith.constant 0 : index
    %0 = vector.load %arg0[%c0, %c0_0] : memref<16x16xf32, #tpu.memory_space<vmem>>, vector<16x16xf32>
    %c0_1 = arith.constant 0 : index
    %c0_2 = arith.constant 0 : index
    %1 = vector.load %arg1[%c0_1, %c0_2] : memref<16x16xf32, #tpu.memory_space<vmem>>, vector<16x16xf32>
    %c0_3 = arith.constant 0 : index
    %c0_4 = arith.constant 0 : index
    %2 = vector.load %arg2[%c0_3, %c0_4] : memref<16x16xf32, #tpu.memory_space<vmem>>, vector<16x16xf32>
    %c0_5 = arith.constant 0 : index
    %c0_6 = arith.constant 0 : index
    %3 = vector.load %arg3[%c0_5, %c0_6] : memref<16x16xf32, #tpu.memory_space<vmem>>, vector<16x16xf32>
    %4 = tpu.concatenate %0, %2 in 0 : vector<16x16xf32>, vector<16x16xf32> -> vector<32x16xf32>
    %cst = arith.constant dense<0.000000e+00> : vector<32x16xf32>
    %5 = tpu.matmul %4, %2, %cst {dimension_numbers = #tpu.dot_dimension_numbers<[1], [0], [0], [1], [0, 0, 1, 1], [], []>} : vector<32x16xf32>, vector<16x16xf32>, vector<32x16xf32> -> vector<32x16xf32>
    %6 = tpu.concatenate %1, %3 in 0 : vector<16x16xf32>, vector<16x16xf32> -> vector<32x16xf32>
    %cst_7 = arith.constant dense<0.000000e+00> : vector<32x16xf32>
    %7 = tpu.matmul %6, %3, %cst_7 {dimension_numbers = #tpu.dot_dimension_numbers<[1], [0], [0], [1], [0, 0, 1, 1], [], []>} : vector<32x16xf32>, vector<16x16xf32>, vector<32x16xf32> -> vector<32x16xf32>
    %cst_8 = arith.constant dense<0.000000e+00> : vector<16x16xf32>
    %8 = tpu.matmul %1, %0, %cst_8 {dimension_numbers = #tpu.dot_dimension_numbers<[1], [0], [0], [1], [0, 0, 1, 1], [], []>} : vector<16x16xf32>, vector<16x16xf32>, vector<16x16xf32> -> vector<16x16xf32>
    %9 = tpu.concatenate %5, %7, %8 in 0 : vector<32x16xf32>, vector<32x16xf32>, vector<16x16xf32> -> vector<80x16xf32>
    %c0_9 = arith.constant 0 : index
    %c0_10 = arith.constant 0 : index
    %10 = vector.load %arg4[%c0_9, %c0_10] : memref<17x16xf32, #tpu.memory_space<vmem>>, vector<16x16xf32>
    %c16 = arith.constant 16 : index
    %c0_11 = arith.constant 0 : index
    %11 = vector.load %arg4[%c16, %c0_11] : memref<17x16xf32, #tpu.memory_space<vmem>>, vector<1x16xf32>
    %cst_12 = arith.constant dense<0.000000e+00> : vector<80x16xf32>
    %12 = tpu.matmul %9, %10, %cst_12 {dimension_numbers = #tpu.dot_dimension_numbers<[1], [0], [0], [1], [0, 0, 1, 1], [], []>} : vector<80x16xf32>, vector<16x16xf32>, vector<80x16xf32> -> vector<80x16xf32>
    %13 = vector.broadcast %11 : vector<1x16xf32> to vector<80x16xf32>
    %14 = arith.addf %12, %13 : vector<80x16xf32>
    %15 = vector.extract_strided_slice %9 {offsets = [0, 0], sizes = [16, 16], strides = [1, 1]} : vector<80x16xf32> to vector<16x16xf32>
    %16 = vector.extract_strided_slice %14 {offsets = [0, 0], sizes = [16, 16], strides = [1, 1]} : vector<80x16xf32> to vector<16x16xf32>
    %cst_13 = arith.constant dense<0.000000e+00> : vector<16x16xf32>
    %17 = tpu.matmul %15, %16, %cst_13 {dimension_numbers = #tpu.dot_dimension_numbers<[1], [0], [0], [1], [0, 0, 1, 1], [], []>} : vector<16x16xf32>, vector<16x16xf32>, vector<16x16xf32> -> vector<16x16xf32>
    %c0_14 = arith.constant 0 : index
    %c0_15 = arith.constant 0 : index
    %18 = vector.load %arg5[%c0_14, %c0_15] : memref<80x16xf32, #tpu.memory_space<vmem>>, vector<16x16xf32>
    tpu.vector_store %arg5[%c0_14, %c0_15], %17 {strides = array<i32>} : memref<80x16xf32, #tpu.memory_space<vmem>>, vector<16x16xf32>,
    %19 = vector.extract_strided_slice %9 {offsets = [16, 0], sizes = [16, 16], strides = [1, 1]} : vector<80x16xf32> to vector<16x16xf32>
    %20 = vector.extract_strided_slice %14 {offsets = [16, 0], sizes = [16, 16], strides = [1, 1]} : vector<80x16xf32> to vector<16x16xf32>
    %cst_16 = arith.constant dense<0.000000e+00> : vector<16x16xf32>
    %21 = tpu.matmul %19, %20, %cst_16 {dimension_numbers = #tpu.dot_dimension_numbers<[1], [0], [0], [1], [0, 0, 1, 1], [], []>} : vector<16x16xf32>, vector<16x16xf32>, vector<16x16xf32> -> vector<16x16xf32>
    %c48 = arith.constant 48 : index
    %c0_17 = arith.constant 0 : index
    %22 = vector.load %arg5[%c48, %c0_17] : memref<80x16xf32, #tpu.memory_space<vmem>>, vector<16x16xf32>
    tpu.vector_store %arg5[%c48, %c0_17], %21 {strides = array<i32>} : memref<80x16xf32, #tpu.memory_space<vmem>>, vector<16x16xf32>,
    %23 = vector.extract_strided_slice %9 {offsets = [32, 0], sizes = [16, 16], strides = [1, 1]} : vector<80x16xf32> to vector<16x16xf32>
    %24 = vector.extract_strided_slice %14 {offsets = [32, 0], sizes = [16, 16], strides = [1, 1]} : vector<80x16xf32> to vector<16x16xf32>
    %cst_18 = arith.constant dense<0.000000e+00> : vector<16x16xf32>
    %25 = tpu.matmul %23, %24, %cst_18 {dimension_numbers = #tpu.dot_dimension_numbers<[1], [0], [0], [1], [0, 0, 1, 1], [], []>} : vector<16x16xf32>, vector<16x16xf32>, vector<16x16xf32> -> vector<16x16xf32>
    %c32 = arith.constant 32 : index
    %c0_19 = arith.constant 0 : index
    %26 = vector.load %arg5[%c32, %c0_19] : memref<80x16xf32, #tpu.memory_space<vmem>>, vector<16x16xf32>
    tpu.vector_store %arg5[%c32, %c0_19], %25 {strides = array<i32>} : memref<80x16xf32, #tpu.memory_space<vmem>>, vector<16x16xf32>,
    %27 = vector.extract_strided_slice %9 {offsets = [48, 0], sizes = [16, 16], strides = [1, 1]} : vector<80x16xf32> to vector<16x16xf32>
    %28 = vector.extract_strided_slice %14 {offsets = [48, 0], sizes = [16, 16], strides = [1, 1]} : vector<80x16xf32> to vector<16x16xf32>
    %cst_20 = arith.constant dense<0.000000e+00> : vector<16x16xf32>
    %29 = tpu.matmul %27, %28, %cst_20 {dimension_numbers = #tpu.dot_dimension_numbers<[1], [0], [0], [1], [0, 0, 1, 1], [], []>} : vector<16x16xf32>, vector<16x16xf32>, vector<16x16xf32> -> vector<16x16xf32>
    %c64 = arith.constant 64 : index
    %c0_21 = arith.constant 0 : index
    %30 = vector.load %arg5[%c64, %c0_21] : memref<80x16xf32, #tpu.memory_space<vmem>>, vector<16x16xf32>
    tpu.vector_store %arg5[%c64, %c0_21], %29 {strides = array<i32>} : memref<80x16xf32, #tpu.memory_space<vmem>>, vector<16x16xf32>,
    %31 = vector.extract_strided_slice %9 {offsets = [64, 0], sizes = [16, 16], strides = [1, 1]} : vector<80x16xf32> to vector<16x16xf32>
    %32 = vector.extract_strided_slice %14 {offsets = [64, 0], sizes = [16, 16], strides = [1, 1]} : vector<80x16xf32> to vector<16x16xf32>
    %cst_22 = arith.constant dense<0.000000e+00> : vector<16x16xf32>
    %33 = tpu.matmul %31, %32, %cst_22 {dimension_numbers = #tpu.dot_dimension_numbers<[1], [0], [0], [1], [0, 0, 1, 1], [], []>} : vector<16x16xf32>, vector<16x16xf32>, vector<16x16xf32> -> vector<16x16xf32>
    %c16_23 = arith.constant 16 : index
    %c0_24 = arith.constant 0 : index
    %34 = vector.load %arg5[%c16_23, %c0_24] : memref<80x16xf32, #tpu.memory_space<vmem>>, vector<16x16xf32>
    tpu.vector_store %arg5[%c16_23, %c0_24], %33 {strides = array<i32>} : memref<80x16xf32, #tpu.memory_space<vmem>>, vector<16x16xf32>,
    return
  }
}

</mosaic_0001>

<llo_original>
// kernel: model_forward.1
$region0: #{model_forward.1}
  #allocation0 [shape = 'u32[]', space=smem, size = 0x4, offset = 0x4, fixed_abs, tag = 'smem constant byte address 0x4 - core index']
  #allocation1 [shape = 'u32[72,128]{1,0:T(1,128)}', space=vmem, size = 0x9000, scoped, tag = 'internal scratch']
  %s0 = inlined_call_operand.vmem [shape: f32[16,16], index: 0, kind: input, shape index: {}]
  %s1 = inlined_call_operand.vmem [shape: f32[16,16], index: 1, kind: input, shape index: {}]
  %s2 = inlined_call_operand.hbm [shape: f32[16,16], index: 2, kind: input, shape index: {}]
  %s3 = inlined_call_operand.hbm [shape: f32[16,16], index: 3, kind: input, shape index: {}]
  %s4 = inlined_call_operand.vmem [shape: f32[17,16], index: 4, kind: input, shape index: {}]
  %s5 = inlined_call_operand.hbm [shape: f32[80,16], index: 5, kind: output, shape index: {}]
  %s6 = sld [smem:[#allocation0]]
  $region38: #{model_forward.1} parent=0
    _
  %s8 = ssub.s32 1, %s6
  %s9 = scalar_select 0, %s8, %s6
  $region1: #{model_forward.1} parent=0
    #allocation2 [shape = 'u8[8192]{0}', space=vmem, size = 0x2000, scoped, tag = 'input window, operand 2, single buffered']
    #allocation3 [shape = 's32[1]{0}', space=sflag, size = 0x4, scoped, tag = 'scoped memory for model_forward.1']
    #allocation4 [shape = 's32[1]{0}', space=sflag, size = 0x4, scoped, tag = 'scoped memory for model_forward.1']
    #allocation5 [shape = 'u8[8192]{0}', space=vmem, size = 0x2000, scoped, tag = 'input window, operand 3, single buffered']
    #allocation6 [shape = 's32[1]{0}', space=sflag, size = 0x4, scoped, tag = 'scoped memory for model_forward.1']
    #allocation7 [shape = 'u8[40960]{0}', space=vmem, size = 0xa000, scoped, tag = 'output window, operand 0, single buffered']
    %10 = vsyncpa [#allocation3], 0
    %11 = vsyncpa [#allocation6], 0
    %12 = vsyncpa [#allocation4], 0
    // Predicated region
    $region2: #{model_forward.1} parent=1 // pred_check
      _
    $region3: #{model_forward.1} parent=1 // pred_check_branch
      %14 = sbr.rel (0) target = $region5
    $region4: #{model_forward.1} parent=1 // pred_region
      _
    $region5: #{model_forward.1} parent=1 // pred_fallthru
      _
    // Predicated region
    $region6: #{model_forward.1} parent=1 // pred_check
      _
    $region7: #{model_forward.1} parent=1 // pred_check_branch
      %16 = sbr.rel (0) target = $region9
    $region8: #{model_forward.1} parent=1 // pred_region
      _
    $region9: #{model_forward.1} parent=1 // pred_fallthru
      _
    // Predicated region
    $region10: #{model_forward.1} parent=1 // pred_check
      _
    $region11: #{model_forward.1} parent=1 // pred_check_branch
      %18 = sbr.rel (0) target = $region13
    $region12: #{model_forward.1} parent=1 // pred_region
      %20 = vsyncadd [#allocation3], 0
      %s21 = sshll.u32 %s2, 4
      %s22 = int_to_ptr.hbm [resolvable:$true] %s21
      %s23 = sshll.u32 [#allocation2], 4
      %s24 = int_to_ptr.vmem [resolvable:$true] %s23
      %29 = dma.hbm_to_vmem [thread:$0]  %s22, 256, %s24, [#allocation3], 128, 128, 8
    $region13: #{model_forward.1} parent=1 // pred_fallthru
      _
    // Predicated region
    $region14: #{model_forward.1} parent=1 // pred_check
      _
    $region15: #{model_forward.1} parent=1 // pred_check_branch
      %31 = sbr.rel (0) target = $region17
    $region16: #{model_forward.1} parent=1 // pred_region
      %33 = vsyncadd [#allocation6], 0
      %s34 = sshll.u32 %s3, 4
      %s35 = int_to_ptr.hbm [resolvable:$true] %s34
      %s36 = sshll.u32 [#allocation5], 4
      %s37 = int_to_ptr.vmem [resolvable:$true] %s36
      %42 = dma.hbm_to_vmem [thread:$0]  %s35, 256, %s37, [#allocation6], 128, 128, 8
    $region17: #{model_forward.1} parent=1 // pred_fallthru
      _
    // Predicated region
    $region18: #{model_forward.1} parent=1 // pred_check
      _
    $region19: #{model_forward.1} parent=1 // pred_check_branch
      %44 = sbr.rel (0) target = $region21
    $region20: #{model_forward.1} parent=1 // pred_region
      _
    $region21: #{model_forward.1} parent=1 // pred_fallthru
      _
    // Predicated region
    $region22: #{model_forward.1} parent=1 // pred_check
      _
    $region23: #{model_forward.1} parent=1 // pred_check_branch
      %46 = sbr.rel (0) target = $region25
    $region24: #{model_forward.1} parent=1 // pred_region
      %48 = dma.done [#allocation3], 256
    $region25: #{model_forward.1} parent=1 // pred_fallthru
      _
    // Predicated region
    $region26: #{model_forward.1} parent=1 // pred_check
      _
    $region27: #{model_forward.1} parent=1 // pred_check_branch
      %50 = sbr.rel (0) target = $region29
    $region28: #{model_forward.1} parent=1 // pred_region
      %52 = dma.done [#allocation6], 256
    $region29: #{model_forward.1} parent=1 // pred_fallthru
      _
    %v53 = vld [vmem:[%s0] sm:$0xff]
    %v54 = vld [vmem:[%s0 + $0x8] sm:$0xff]
    %v55 = vld [vmem:[%s1] sm:$0xff]
    %v56 = vld [vmem:[%s1 + $0x8] sm:$0xff]
    %v57 = vld [vmem:[#allocation2] sm:$0xff]
    %v58 = vld [vmem:[#allocation2 + $0x8] sm:$0xff]
    %v59 = vld [vmem:[#allocation5] sm:$0xff]
    %v60 = vld [vmem:[#allocation5 + $0x8] sm:$0xff]
    %vm61 = vcmask 130048
    %v63 = vsel %vm61, %v53, 0
    %v66 = vsel %vm61, %v54, 0
    %v69 = vsel %vm61, %v57, 0
    %v72 = vsel %vm61, %v58, 0
    %74 = vmatpush.msra.mxu0 0.0
    %75 = vmatpush.msra.mxu0 0.0
    %76 = vmatpush.msra.mxu0 0.0
    %77 = vmatpush.msra.mxu0 0.0
    %78 = vmatpush.msra.mxu0 0.0
    %79 = vmatpush.msra.mxu0 0.0
    %80 = vmatpush.msra.mxu0 0.0
    %81 = vmatpush.msra.mxu0 0.0
    %82 = vmatpush.msra.mxu0 0.0
    %83 = vmatpush.msra.mxu0 0.0
    %84 = vmatpush.msra.mxu0 0.0
    %85 = vmatpush.msra.mxu0 0.0
    %86 = vmatpush.msra.mxu0 0.0
    %87 = vmatpush.msra.mxu0 0.0
    %88 = vmatpush.msra.mxu0 %v58
    %89 = vmatpush.msra.mxu0 %v57
    %90 = vmatmul.f32.gmra.mxu0 %v63
    %v91 = vpop.f32.mrf.mxu0
    %v92 = vadd.f32 0.0, %v91
    %93 = vmatmul.f32.gmra.mxu0 %v66
    %v94 = vpop.f32.mrf.mxu0
    %v95 = vadd.f32 0.0, %v94
    %96 = vmatmul.f32.gmra.mxu0 %v69
    %v97 = vpop.f32.mrf.mxu0
    %v98 = vadd.f32 0.0, %v97
    %99 = vmatmul.f32.gmra.mxu0 %v72
    %v100 = vpop.f32.mrf.mxu0
    %v101 = vadd.f32 0.0, %v100
    %102 = vdwg.mxu0
    %v104 = vsel %vm61, %v55, 0
    %v107 = vsel %vm61, %v56, 0
    %v110 = vsel %vm61, %v59, 0
    %v113 = vsel %vm61, %v60, 0
    %115 = vmatpush.msra.mxu0 0.0
    %116 = vmatpush.msra.mxu0 0.0
    %117 = vmatpush.msra.mxu0 0.0
    %118 = vmatpush.msra.mxu0 0.0
    %119 = vmatpush.msra.mxu0 0.0
    %120 = vmatpush.msra.mxu0 0.0
    %121 = vmatpush.msra.mxu0 0.0
    %122 = vmatpush.msra.mxu0 0.0
    %123 = vmatpush.msra.mxu0 0.0
    %124 = vmatpush.msra.mxu0 0.0
    %125 = vmatpush.msra.mxu0 0.0
    %126 = vmatpush.msra.mxu0 0.0
    %127 = vmatpush.msra.mxu0 0.0
    %128 = vmatpush.msra.mxu0 0.0
    %129 = vmatpush.msra.mxu0 %v60
    %130 = vmatpush.msra.mxu0 %v59
    %131 = vmatmul.f32.gmra.mxu0 %v104
    %v132 = vpop.f32.mrf.mxu0
    %v133 = vadd.f32 0.0, %v132
    %134 = vmatmul.f32.gmra.mxu0 %v107
    %v135 = vpop.f32.mrf.mxu0
    %v136 = vadd.f32 0.0, %v135
    %137 = vmatmul.f32.gmra.mxu0 %v110
    %v138 = vpop.f32.mrf.mxu0
    %v139 = vadd.f32 0.0, %v138
    %140 = vmatmul.f32.gmra.mxu0 %v113
    %v141 = vpop.f32.mrf.mxu0
    %v142 = vadd.f32 0.0, %v141
    %143 = vdwg.mxu0
    %144 = vmatpush.msra.mxu0 0.0
    %145 = vmatpush.msra.mxu0 0.0
    %146 = vmatpush.msra.mxu0 0.0
    %147 = vmatpush.msra.mxu0 0.0
    %148 = vmatpush.msra.mxu0 0.0
    %149 = vmatpush.msra.mxu0 0.0
    %150 = vmatpush.msra.mxu0 0.0
    %151 = vmatpush.msra.mxu0 0.0
    %152 = vmatpush.msra.mxu0 0.0
    %153 = vmatpush.msra.mxu0 0.0
    %154 = vmatpush.msra.mxu0 0.0
    %155 = vmatpush.msra.mxu0 0.0
    %156 = vmatpush.msra.mxu0 0.0
    %157 = vmatpush.msra.mxu0 0.0
    %158 = vmatpush.msra.mxu0 %v54
    %159 = vmatpush.msra.mxu0 %v53
    %160 = vmatmul.f32.gmra.mxu0 %v104
    %v161 = vpop.f32.mrf.mxu0
    %v162 = vadd.f32 0.0, %v161
    %163 = vmatmul.f32.gmra.mxu0 %v107
    %v164 = vpop.f32.mrf.mxu0
    %v165 = vadd.f32 0.0, %v164
    %166 = vdwg.mxu0
    %v167 = vld [vmem:[%s4] sm:$0xff]
    %v168 = vld [vmem:[%s4 + $0x8] sm:$0xff]
    %v169 = vld [vmem:[%s4 + $0x10] sm:$0x1]
    %v170 = vperm.slane %v169, 0
    %v172 = vsel %vm61, %v92, 0
    %v175 = vsel %vm61, %v95, 0
    %v178 = vsel %vm61, %v98, 0
    %v181 = vsel %vm61, %v101, 0
    %v184 = vsel %vm61, %v133, 0
    %v187 = vsel %vm61, %v136, 0
    %v190 = vsel %vm61, %v139, 0
    %v193 = vsel %vm61, %v142, 0
    %v196 = vsel %vm61, %v162, 0
    %v199 = vsel %vm61, %v165, 0
    %201 = vmatpush.msra.mxu0 0.0
    %202 = vmatpush.msra.mxu0 0.0
    %203 = vmatpush.msra.mxu0 0.0
    %204 = vmatpush.msra.mxu0 0.0
    %205 = vmatpush.msra.mxu0 0.0
    %206 = vmatpush.msra.mxu0 0.0
    %207 = vmatpush.msra.mxu0 0.0
    %208 = vmatpush.msra.mxu0 0.0
    %209 = vmatpush.msra.mxu0 0.0
    %210 = vmatpush.msra.mxu0 0.0
    %211 = vmatpush.msra.mxu0 0.0
    %212 = vmatpush.msra.mxu0 0.0
    %213 = vmatpush.msra.mxu0 0.0
    %214 = vmatpush.msra.mxu0 0.0
    %215 = vmatpush.msra.mxu0 %v168
    %216 = vmatpush.msra.mxu0 %v167
    %217 = vmatmul.f32.gmra.mxu0 %v172
    %v218 = vpop.f32.mrf.mxu0
    %v219 = vadd.f32 %v170, %v218
    %220 = vmatmul.f32.gmra.mxu0 %v175
    %v221 = vpop.f32.mrf.mxu0
    %v222 = vadd.f32 %v170, %v221
    %223 = vmatmul.f32.gmra.mxu0 %v178
    %v224 = vpop.f32.mrf.mxu0
    %v225 = vadd.f32 %v170, %v224
    %226 = vmatmul.f32.gmra.mxu0 %v181
    %v227 = vpop.f32.mrf.mxu0
    %v228 = vadd.f32 %v170, %v227
    %229 = vmatmul.f32.gmra.mxu0 %v184
    %v230 = vpop.f32.mrf.mxu0
    %v231 = vadd.f32 %v170, %v230
    %232 = vmatmul.f32.gmra.mxu0 %v187
    %v233 = vpop.f32.mrf.mxu0
    %v234 = vadd.f32 %v170, %v233
    %235 = vmatmul.f32.gmra.mxu0 %v190
    %v236 = vpop.f32.mrf.mxu0
    %v237 = vadd.f32 %v170, %v236
    %238 = vmatmul.f32.gmra.mxu0 %v193
    %v239 = vpop.f32.mrf.mxu0
    %v240 = vadd.f32 %v170, %v239
    %241 = vmatmul.f32.gmra.mxu0 %v196
    %v242 = vpop.f32.mrf.mxu0
    %v243 = vadd.f32 %v170, %v242
    %244 = vmatmul.f32.gmra.mxu0 %v199
    %v245 = vpop.f32.mrf.mxu0
    %v246 = vadd.f32 %v170, %v245
    %247 = vdwg.mxu0
    %248 = vmatpush.msra.mxu0 0.0
    %249 = vmatpush.msra.mxu0 0.0
    %250 = vmatpush.msra.mxu0 0.0
    %251 = vmatpush.msra.mxu0 0.0
    %252 = vmatpush.msra.mxu0 0.0
    %253 = vmatpush.msra.mxu0 0.0
    %254 = vmatpush.msra.mxu0 0.0
    %255 = vmatpush.msra.mxu0 0.0
    %256 = vmatpush.msra.mxu0 0.0
    %257 = vmatpush.msra.mxu0 0.0
    %258 = vmatpush.msra.mxu0 0.0
    %259 = vmatpush.msra.mxu0 0.0
    %260 = vmatpush.msra.mxu0 0.0
    %261 = vmatpush.msra.mxu0 0.0
    %262 = vmatpush.msra.mxu0 %v222
    %263 = vmatpush.msra.mxu0 %v219
    %264 = vmatmul.f32.gmra.mxu0 %v172
    %v265 = vpop.f32.mrf.mxu0
    %v266 = vadd.f32 0.0, %v265
    %267 = vmatmul.f32.gmra.mxu0 %v175
    %v268 = vpop.f32.mrf.mxu0
    %v269 = vadd.f32 0.0, %v268
    %270 = vdwg.mxu0
    %271 = vst.msk [vmem:[#allocation7] sm:$0xff] %vm61, %v266
    %272 = vst.msk [vmem:[#allocation7 + $0x8] sm:$0xff] %vm61, %v269
    %273 = vmatpush.msra.mxu0 0.0
    %274 = vmatpush.msra.mxu0 0.0
    %275 = vmatpush.msra.mxu0 0.0
    %276 = vmatpush.msra.mxu0 0.0
    %277 = vmatpush.msra.mxu0 0.0
    %278 = vmatpush.msra.mxu0 0.0
    %279 = vmatpush.msra.mxu0 0.0
    %280 = vmatpush.msra.mxu0 0.0
    %281 = vmatpush.msra.mxu0 0.0
    %282 = vmatpush.msra.mxu0 0.0
    %283 = vmatpush.msra.mxu0 0.0
    %284 = vmatpush.msra.mxu0 0.0
    %285 = vmatpush.msra.mxu0 0.0
    %286 = vmatpush.msra.mxu0 0.0
    %287 = vmatpush.msra.mxu0 %v228
    %288 = vmatpush.msra.mxu0 %v225
    %289 = vmatmul.f32.gmra.mxu0 %v178
    %v290 = vpop.f32.mrf.mxu0
    %v291 = vadd.f32 0.0, %v290
    %292 = vmatmul.f32.gmra.mxu0 %v181
    %v293 = vpop.f32.mrf.mxu0
    %v294 = vadd.f32 0.0, %v293
    %295 = vdwg.mxu0
    %296 = vst.msk [vmem:[#allocation7 + $0x30] sm:$0xff] %vm61, %v291
    %297 = vst.msk [vmem:[#allocation7 + $0x38] sm:$0xff] %vm61, %v294
    %298 = vmatpush.msra.mxu0 0.0
    %299 = vmatpush.msra.mxu0 0.0
    %300 = vmatpush.msra.mxu0 0.0
    %301 = vmatpush.msra.mxu0 0.0
    %302 = vmatpush.msra.mxu0 0.0
    %303 = vmatpush.msra.mxu0 0.0
    %304 = vmatpush.msra.mxu0 0.0
    %305 = vmatpush.msra.mxu0 0.0
    %306 = vmatpush.msra.mxu0 0.0
    %307 = vmatpush.msra.mxu0 0.0
    %308 = vmatpush.msra.mxu0 0.0
    %309 = vmatpush.msra.mxu0 0.0
    %310 = vmatpush.msra.mxu0 0.0
    %311 = vmatpush.msra.mxu0 0.0
    %312 = vmatpush.msra.mxu0 %v234
    %313 = vmatpush.msra.mxu0 %v231
    %314 = vmatmul.f32.gmra.mxu0 %v184
    %v315 = vpop.f32.mrf.mxu0
    %v316 = vadd.f32 0.0, %v315
    %317 = vmatmul.f32.gmra.mxu0 %v187
    %v318 = vpop.f32.mrf.mxu0
    %v319 = vadd.f32 0.0, %v318
    %320 = vdwg.mxu0
    %321 = vst.msk [vmem:[#allocation7 + $0x20] sm:$0xff] %vm61, %v316
    %322 = vst.msk [vmem:[#allocation7 + $0x28] sm:$0xff] %vm61, %v319
    %323 = vmatpush.msra.mxu0 0.0
    %324 = vmatpush.msra.mxu0 0.0
    %325 = vmatpush.msra.mxu0 0.0
    %326 = vmatpush.msra.mxu0 0.0
    %327 = vmatpush.msra.mxu0 0.0
    %328 = vmatpush.msra.mxu0 0.0
    %329 = vmatpush.msra.mxu0 0.0
    %330 = vmatpush.msra.mxu0 0.0
    %331 = vmatpush.msra.mxu0 0.0
    %332 = vmatpush.msra.mxu0 0.0
    %333 = vmatpush.msra.mxu0 0.0
    %334 = vmatpush.msra.mxu0 0.0
    %335 = vmatpush.msra.mxu0 0.0
    %336 = vmatpush.msra.mxu0 0.0
    %337 = vmatpush.msra.mxu0 %v240
    %338 = vmatpush.msra.mxu0 %v237
    %339 = vmatmul.f32.gmra.mxu0 %v190
    %v340 = vpop.f32.mrf.mxu0
    %v341 = vadd.f32 0.0, %v340
    %342 = vmatmul.f32.gmra.mxu0 %v193
    %v343 = vpop.f32.mrf.mxu0
    %v344 = vadd.f32 0.0, %v343
    %345 = vdwg.mxu0
    %346 = vst.msk [vmem:[#allocation7 + $0x40] sm:$0xff] %vm61, %v341
    %347 = vst.msk [vmem:[#allocation7 + $0x48] sm:$0xff] %vm61, %v344
    %348 = vmatpush.msra.mxu0 0.0
    %349 = vmatpush.msra.mxu0 0.0
    %350 = vmatpush.msra.mxu0 0.0
    %351 = vmatpush.msra.mxu0 0.0
    %352 = vmatpush.msra.mxu0 0.0
    %353 = vmatpush.msra.mxu0 0.0
    %354 = vmatpush.msra.mxu0 0.0
    %355 = vmatpush.msra.mxu0 0.0
    %356 = vmatpush.msra.mxu0 0.0
    %357 = vmatpush.msra.mxu0 0.0
    %358 = vmatpush.msra.mxu0 0.0
    %359 = vmatpush.msra.mxu0 0.0
    %360 = vmatpush.msra.mxu0 0.0
    %361 = vmatpush.msra.mxu0 0.0
    %362 = vmatpush.msra.mxu0 %v246
    %363 = vmatpush.msra.mxu0 %v243
    %364 = vmatmul.f32.gmra.mxu0 %v196
    %v365 = vpop.f32.mrf.mxu0
    %v366 = vadd.f32 0.0, %v365
    %367 = vmatmul.f32.gmra.mxu0 %v199
    %v368 = vpop.f32.mrf.mxu0
    %v369 = vadd.f32 0.0, %v368
    %370 = vdwg.mxu0
    %371 = vst.msk [vmem:[#allocation7 + $0x10] sm:$0xff] %vm61, %v366
    %372 = vst.msk [vmem:[#allocation7 + $0x18] sm:$0xff] %vm61, %v369
    // Predicated region
    $region30: #{model_forward.1} parent=1 // pred_check
      _
    $region31: #{model_forward.1} parent=1 // pred_check_branch
      %374 = sbr.rel (0) target = $region33
    $region32: #{model_forward.1} parent=1 // pred_region
      %376 = vsyncadd [#allocation4], 0
      %s377 = sshll.u32 [#allocation7], 4
      %s378 = int_to_ptr.vmem [resolvable:$true] %s377
      %s379 = sshll.u32 %s5, 4
      %s380 = int_to_ptr.hbm [resolvable:$true] %s379
      %385 = dma.vmem_to_hbm [thread:$0]  %s378, 1280, %s380, [#allocation4], 128, 128, 8
    $region33: #{model_forward.1} parent=1 // pred_fallthru
      _
    // Predicated region
    $region34: #{model_forward.1} parent=1 // pred_check
      _
    $region35: #{model_forward.1} parent=1 // pred_check_branch
      %387 = sbr.rel (0) target = $region37
    $region36: #{model_forward.1} parent=1 // pred_region
      %389 = dma.done [#allocation4], 1280
    $region37: #{model_forward.1} parent=1 // pred_fallthru
      _
    %390 = vsyncpa [#allocation3], 1
    %391 = vsyncpa [#allocation6], 1
    %392 = vsyncpa [#allocation4], 1

</llo_original>
